<compile_context>
chip_gen: v7x
topology: tpu7x:2x2x1
jax: 0.10.0
libtpu: 0.0.40
codegen_flags: <defaults>
</compile_context>

<pallas_src>
import jax
import jax.numpy as jnp
from jax.experimental import pallas as pl
from jax.experimental.pallas import tpu as pltpu


def _round_up(x, m):
    return (x + m - 1) // m * m


def _pick_tile(extent_padded, requested, align, min_blocks=1):
    """Pick a tile size <= requested, aligned, dividing a padded extent.

    If min_blocks > 1 and the extent allows it, cap the tile so the grid axis
    keeps at least `min_blocks` blocks (v7x dual-TensorCore sharding).
    """
    t = min(requested, extent_padded)
    if min_blocks > 1 and extent_padded >= min_blocks * align:
        t = min(t, extent_padded // min_blocks)
    t = max(align, (t // align) * align)
    return t


# --------------------------- kernels ---------------------------------------

def _linear_kernel_f32out(x_ref, wt_ref, b_ref, o_ref):
    """f32-output variant: accumulate directly into the K-resident output tile."""
    k = pl.program_id(2)

    @pl.when(k == 0)
    def _():
        o_ref[...] = jnp.zeros_like(o_ref)

    o_ref[...] += jnp.dot(
        x_ref[...], wt_ref[...], preferred_element_type=jnp.float32
    )

    @pl.when(k == pl.num_programs(2) - 1)
    def _():
        o_ref[...] += b_ref[...].astype(jnp.float32)


def _linear_kernel_acc(x_ref, wt_ref, b_ref, o_ref, acc_ref):
    """Generic-output variant: f32 scratch accumulator, cast once in the epilogue."""
    k = pl.program_id(2)

    @pl.when(k == 0)
    def _():
        acc_ref[...] = jnp.zeros_like(acc_ref)

    acc_ref[...] += jnp.dot(
        x_ref[...], wt_ref[...], preferred_element_type=jnp.float32
    )

    @pl.when(k == pl.num_programs(2) - 1)
    def _():
        o_ref[...] = (
            acc_ref[...] + b_ref[...].astype(jnp.float32)
        ).astype(o_ref.dtype)


# --------------------------- forward ----------------------------------------

def final_classify_forward(features, weight_t, bias2d, *, class_size, tn, tk,
                           tm=256, param_dtype=None, vmem_limit_bytes=None,
                           weight_buffers=None):
    """y = features @ weight + bias using a pre-padded, pre-transposed weight.

    features : (B, F)                activations (padded per call; small)
    weight_t : (Fp, Cp)              kernel-ready weight (padded once at init)
    bias2d   : (1, Cp) float32       kernel-ready bias   (padded once at init)
    returns  : (B, class_size) in features.dtype
    """
    B, F = features.shape
    Fp, Cp = weight_t.shape
    assert Fp % tk == 0 and Cp % tn == 0
    assert F <= Fp
    out_dtype = features.dtype

    x = features
    if param_dtype is not None and x.dtype != param_dtype:
        x = x.astype(param_dtype)          # activations are small; cheap per call

    # (8,128)-legal M tile, clamped to the (padded) batch.
    tm = _round_up(min(tm, _round_up(B, 8)), 8)
    Bp = _round_up(B, tm)

    if (Bp, Fp) != (B, F):
        # Explicit zero padding keeps the K reduction exact.
        x = jnp.pad(x, ((0, Bp - B), (0, Fp - F)))

    grid = (Bp // tm, Cp // tn, Fp // tk)

    x_bytes = jnp.dtype(x.dtype).itemsize
    w_bytes = jnp.dtype(weight_t.dtype).itemsize
    o_bytes = jnp.dtype(out_dtype).itemsize
    cost = pl.CostEstimate(
        flops=2 * Bp * Fp * Cp,
        bytes_accessed=(Bp * Fp * x_bytes) * (Cp // tn)    # x re-streamed per N tile
        + (Fp * Cp * w_bytes) * (Bp // tm)                 # weight re-streamed per M tile
        + (Cp * 4) * (Bp // tm)                            # bias per M tile
        + Bp * Cp * o_bytes,                               # output written once
        transcendentals=0,
    )

    w_spec_kwargs = {}
    if weight_buffers is not None:
        # Post-tile-sweep knob: deeper pipelining on the long strided weight DMA.
        w_spec_kwargs["pipeline_mode"] = pl.Buffered(weight_buffers)

    in_specs = [
        pl.BlockSpec((tm, tk), lambda i, j, k: (i, k)),                    # activations
        pl.BlockSpec((tk, tn), lambda i, j, k: (k, j), **w_spec_kwargs),   # weight (F,C)
        pl.BlockSpec((1, tn), lambda i, j, k: (0, j)),                     # bias: N only
    ]
    out_spec = pl.BlockSpec((tm, tn), lambda i, j, k: (i, j))

    if out_dtype == jnp.float32:
        kernel = _linear_kernel_f32out
        scratch_shapes = []
    else:
        kernel = _linear_kernel_acc
        scratch_shapes = [pltpu.VMEM((tm, tn), jnp.float32)]

    compiler_kwargs = dict(
        dimension_semantics=("parallel", "parallel", "arbitrary"),
    )
    if vmem_limit_bytes is not None:
        compiler_kwargs["vmem_limit_bytes"] = vmem_limit_bytes

    out = pl.pallas_call(
        kernel,
        out_shape=jax.ShapeDtypeStruct((Bp, Cp), out_dtype),
        grid_spec=pltpu.PrefetchScalarGridSpec(
            num_scalar_prefetch=0,
            grid=grid,
            in_specs=in_specs,
            out_specs=out_spec,
            scratch_shapes=scratch_shapes,
        ),
        compiler_params=pltpu.CompilerParams(**compiler_kwargs),
        cost_estimate=cost,
    )(x, weight_t, bias2d)

    if (Bp, Cp) != (B, class_size):
        # No-op when class_size % tn == 0 and B % tm == 0 (pick tn to divide C
        # at production sizes so the logits are never re-copied).
        out = out[:B, :class_size]
    return out


# --------------------------- module wrapper ---------------------------------

class FinalClassify:
    """Pallas-TPU port of the PyTorch FinalClassify (nn.Linear) module.

    All heavyweight parameter work (transpose, tile-aligned zero padding,
    optional cast to a narrow dtype) happens ONCE here; the per-call path only
    touches the activations.

    param_dtype: None (exact f32 nn.Linear numerics) or jnp.bfloat16
                 (recommended: halves weight HBM traffic, native MXU path;
                 accumulation stays f32).  On v7x a float8 dtype can be tried
                 if the downstream softmax/argmax tolerates it.
    tm/tn/tk:    tile sizes.  Defaults (256, 512, 1024) keep the double-buffered
                 footprint ~4 MiB with bf16 -- inside v5e's 16 MiB default scoped
                 VMEM.  On v6e grow toward tn=1024/tk=2048 with
                 vmem_limit_bytes ~ 64-96 MiB; on v7x re-check against the
                 64 MiB physical / 32 MiB scoped ceiling.
    """

    def __init__(self, weight, bias, *, param_dtype=None,
                 tm=256, tn=512, tk=1024,
                 vmem_limit_bytes=None, weight_buffers=None):
        weight = jnp.asarray(weight)            # (class_size, in_features), nn.Linear layout
        bias = jnp.asarray(bias)                # (class_size,)
        C, F = weight.shape

        self.in_features = F
        self.class_size = C
        self.param_dtype = param_dtype
        self.tm = tm
        self.vmem_limit_bytes = vmem_limit_bytes
        self.weight_buffers = weight_buffers

        # Tile selection: lane-dense N tile, keep >=2 N blocks when possible so
        # both v7x TensorCores get work even when the batch axis has 1 block.
        cp128 = _round_up(C, 128)
        self.tn = _pick_tile(cp128, tn, 128, min_blocks=2)
        self.tk = _pick_tile(_round_up(F, 128), tk, 128)
        self.Cp = _round_up(C, self.tn)
        self.Fp = _round_up(F, self.tk)

        # Transpose + pad + (optional) cast ONCE.
        wt = weight.T                                        # (F, C)
        if (self.Fp, self.Cp) != (F, C):
            wt = jnp.pad(wt, ((0, self.Fp - F), (0, self.Cp - C)))
        if param_dtype is not None:
            wt = wt.astype(param_dtype)
        self.weight_t = wt                                   # (Fp, Cp), kernel-ready

        b2 = bias.reshape(1, C).astype(jnp.float32)
        if self.Cp != C:
            b2 = jnp.pad(b2, ((0, 0), (0, self.Cp - C)))
        self.bias2d = b2                                     # (1, Cp) f32, kernel-ready

    def __call__(self, features):
        return final_classify_forward(
            features, self.weight_t, self.bias2d,
            class_size=self.class_size,
            tn=self.tn, tk=self.tk, tm=self.tm,
            param_dtype=self.param_dtype,
            vmem_limit_bytes=self.vmem_limit_bytes,
            weight_buffers=self.weight_buffers,
        )


if __name__ == "__main__":
    # Small shapes implied by the module: batch=2, in_features=32, class_size=8.
    # At sizes this tiny the whole op is one MXU pass; the tiling pays off at
    # production (vocab-sized) class_size.
    B, F, C = 2, 32, 8

    key = jax.random.PRNGKey(0)
    kx, kw, kb = jax.random.split(key, 3)

    features = jax.random.normal(kx, (B, F), dtype=jnp.float32)
    weight = jax.random.normal(kw, (C, F), dtype=jnp.float32) * (1.0 / jnp.sqrt(F))
    bias = jax.random.normal(kb, (C,), dtype=jnp.float32) * 0.01

    # Pure-JAX reference of nn.Linear semantics.
    y_ref = features @ weight.T + bias

    # 1) Exact f32 path (bit-for-bit nn.Linear semantics).
    model_f32 = FinalClassify(weight, bias, param_dtype=None)
    y = jax.block_until_ready(jax.jit(lambda f: model_f32(f))(features))
    assert y.shape == (B, C)
    assert jnp.allclose(y, y_ref, atol=1e-5, rtol=1e-5)

    # 2) bf16-weight / f32-accumulate path (recommended production config:
    #    half the weight HBM bytes, native MXU dtype).
    model_bf16 = FinalClassify(weight, bias, param_dtype=jnp.bfloat16)
    y16 = jax.block_until_ready(jax.jit(lambda f: model_bf16(f))(features))
    assert y16.shape == (B, C)
    assert jnp.allclose(y16, y_ref, atol=5e-2, rtol=5e-2)

    print("KERNEL_OK")
</pallas_src>

<mosaic_0001>
module attributes {stable_mosaic.version = 11 : i64} {
  func.func @_linear_kernel_f32out(%arg0: i32, %arg1: i32, %arg2: i32, %arg3: memref<8x128xf32, #tpu.memory_space<vmem>>, %arg4: memref<128x128xf32, #tpu.memory_space<vmem>>, %arg5: memref<1x128xf32, #tpu.memory_space<vmem>>, %arg6: memref<8x128xf32, #tpu.memory_space<vmem>>) attributes {dimension_semantics = [#tpu.dimension_semantics<parallel>, #tpu.dimension_semantics<parallel>, #tpu.dimension_semantics<arbitrary>], iteration_bounds = array<i64: 1, 1, 1>, scalar_prefetch = 0 : i64, scratch_operands = 0 : i64, tpu.core_type = #tpu.core_type<tc>, window_params = [{transform_indices = @transform_0, window_bounds = array<i64: 8, 128>}, {transform_indices = @transform_1, window_bounds = array<i64: 128, 128>}, {transform_indices = @transform_2, window_bounds = array<i64: 1, 128>}, {transform_indices = @transform_3, window_bounds = array<i64: 8, 128>}]} {
    %c0_i32 = arith.constant 0 : i32
    %0 = arith.cmpi eq, %arg2, %c0_i32 : i32
    %1 = arith.extui %0 : i1 to i32
    %c0_i32_0 = arith.constant 0 : i32
    %2 = arith.cmpi ne, %1, %c0_i32_0 : i32
    scf.if %2 {
      %cst_10 = arith.constant 0.000000e+00 : f32
      %12 = vector.broadcast %cst_10 : f32 to vector<8x128xf32>
      %c0_11 = arith.constant 0 : index
      %c0_12 = arith.constant 0 : index
      %13 = vector.load %arg6[%c0_11, %c0_12] : memref<8x128xf32, #tpu.memory_space<vmem>>, vector<8x128xf32>
      tpu.vector_store %arg6[%c0_11, %c0_12], %12 {strides = array<i32>} : memref<8x128xf32, #tpu.memory_space<vmem>>, vector<8x128xf32>,
    } else {
    }
    %c0 = arith.constant 0 : index
    %c0_1 = arith.constant 0 : index
    %3 = vector.load %arg6[%c0, %c0_1] : memref<8x128xf32, #tpu.memory_space<vmem>>, vector<8x128xf32>
    %c0_2 = arith.constant 0 : index
    %c0_3 = arith.constant 0 : index
    %4 = vector.load %arg3[%c0_2, %c0_3] : memref<8x128xf32, #tpu.memory_space<vmem>>, vector<8x128xf32>
    %c0_4 = arith.constant 0 : index
    %c0_5 = arith.constant 0 : index
    %5 = vector.load %arg4[%c0_4, %c0_5] : memref<128x128xf32, #tpu.memory_space<vmem>>, vector<128x128xf32>
    %cst = arith.constant dense<0.000000e+00> : vector<8x128xf32>
    %6 = tpu.matmul %4, %5, %cst {dimension_numbers = #tpu.dot_dimension_numbers<[1], [0], [0], [1], [0, 0, 1, 1], [], []>} : vector<8x128xf32>, vector<128x128xf32>, vector<8x128xf32> -> vector<8x128xf32>
    %7 = arith.addf %3, %6 : vector<8x128xf32>
    %c0_6 = arith.constant 0 : index
    %c0_7 = arith.constant 0 : index
    %8 = vector.load %arg6[%c0_6, %c0_7] : memref<8x128xf32, #tpu.memory_space<vmem>>, vector<8x128xf32>
    tpu.vector_store %arg6[%c0_6, %c0_7], %7 {strides = array<i32>} : memref<8x128xf32, #tpu.memory_space<vmem>>, vector<8x128xf32>,
    %c0_i32_8 = arith.constant 0 : i32
    %9 = arith.cmpi eq, %arg2, %c0_i32_8 : i32
    %10 = arith.extui %9 : i1 to i32
    %c0_i32_9 = arith.constant 0 : i32
    %11 = arith.cmpi ne, %10, %c0_i32_9 : i32
    scf.if %11 {
      %c0_10 = arith.constant 0 : index
      %c0_11 = arith.constant 0 : index
      %12 = vector.load %arg6[%c0_10, %c0_11] : memref<8x128xf32, #tpu.memory_space<vmem>>, vector<8x128xf32>
      %c0_12 = arith.constant 0 : index
      %c0_13 = arith.constant 0 : index
      %13 = vector.load %arg5[%c0_12, %c0_13] : memref<1x128xf32, #tpu.memory_space<vmem>>, vector<1x128xf32>
      %14 = vector.broadcast %13 : vector<1x128xf32> to vector<8x128xf32>
      %15 = arith.addf %12, %14 : vector<8x128xf32>
      %c0_14 = arith.constant 0 : index
      %c0_15 = arith.constant 0 : index
      %16 = vector.load %arg6[%c0_14, %c0_15] : memref<8x128xf32, #tpu.memory_space<vmem>>, vector<8x128xf32>
      tpu.vector_store %arg6[%c0_14, %c0_15], %15 {strides = array<i32>} : memref<8x128xf32, #tpu.memory_space<vmem>>, vector<8x128xf32>,
    } else {
    }
    return
  }
  func.func @transform_0(%arg0: i32, %arg1: i32, %arg2: i32) -> (i32, i32) {
    %c0_i32 = arith.constant 0 : i32
    return %arg0, %arg2 : i32, i32
  }
  func.func @transform_1(%arg0: i32, %arg1: i32, %arg2: i32) -> (i32, i32) {
    %c0_i32 = arith.constant 0 : i32
    return %arg2, %arg1 : i32, i32
  }
  func.func @transform_2(%arg0: i32, %arg1: i32, %arg2: i32) -> (i32, i32) {
    %c0_i32 = arith.constant 0 : i32
    %c0_i32_0 = arith.constant 0 : i32
    return %c0_i32, %arg1 : i32, i32
  }
  func.func @transform_3(%arg0: i32, %arg1: i32, %arg2: i32) -> (i32, i32) {
    %c0_i32 = arith.constant 0 : i32
    return %arg0, %arg1 : i32, i32
  }
}

</mosaic_0001>

<llo_original>
// kernel: _lambda_.1
$region0: #{_lambda_.1}
  #allocation0 [shape = 'u32[]', space=smem, size = 0x4, offset = 0x4, fixed_abs, tag = 'smem constant byte address 0x4 - core index']
  #allocation1 [shape = 'u32[144,128]{1,0:T(1,128)}', space=vmem, size = 0x12000, scoped, tag = 'internal scratch']
  %s0 = inlined_call_operand.vmem [shape: f32[8,128], index: 0, kind: input, shape index: {}]
  %s1 = inlined_call_operand.hbm [shape: f32[128,128], index: 1, kind: input, shape index: {}]
  %s2 = inlined_call_operand.vmem [shape: f32[1,128], index: 2, kind: input, shape index: {}]
  %s3 = inlined_call_operand.vmem [shape: f32[8,128], index: 3, kind: output, shape index: {}]
  %s4 = sld [smem:[#allocation0]]
  $region34: #{_lambda_.1} parent=0
    _
  %s6 = ssub.s32 1, %s4
  %s7 = scalar_select 0, %s6, %s4
  $region1: #{_lambda_.1} parent=0
    #allocation2 [shape = 'u8[65536]{0}', space=vmem, size = 0x10000, scoped, tag = 'input window, operand 1, single buffered']
    #allocation3 [shape = 's32[1]{0}', space=sflag, size = 0x4, scoped, tag = 'scoped memory for _lambda_.1']
    %8 = vsyncpa [#allocation3], 0
    // Predicated region
    $region2: #{_lambda_.1} parent=1 // pred_check
      _
    $region3: #{_lambda_.1} parent=1 // pred_check_branch
      %10 = sbr.rel (0) target = $region5
    $region4: #{_lambda_.1} parent=1 // pred_region
      _
    $region5: #{_lambda_.1} parent=1 // pred_fallthru
      _
    // Predicated region
    $region6: #{_lambda_.1} parent=1 // pred_check
      _
    $region7: #{_lambda_.1} parent=1 // pred_check_branch
      %12 = sbr.rel (0) target = $region9
    $region8: #{_lambda_.1} parent=1 // pred_region
      %s14 = ssub.s32 2048, 2048
      %15 = vsyncadd [#allocation3], %s14
      %s16 = sshll.u32 [#allocation2], 4
      %s17 = int_to_ptr.vmem [resolvable:$true] %s16
      %22 = dma.hbm_to_vmem [thread:$0]  %s1, 2048, %s17, [#allocation3], 128, 128, 8
    $region9: #{_lambda_.1} parent=1 // pred_fallthru
      _
    // Predicated region
    $region10: #{_lambda_.1} parent=1 // pred_check
      _
    $region11: #{_lambda_.1} parent=1 // pred_check_branch
      %24 = sbr.rel (0) target = $region13
    $region12: #{_lambda_.1} parent=1 // pred_region
      _
    $region13: #{_lambda_.1} parent=1 // pred_fallthru
      _
    // Predicated region
    $region14: #{_lambda_.1} parent=1 // pred_check
      _
    $region15: #{_lambda_.1} parent=1 // pred_check_branch
      %26 = sbr.rel (0) target = $region17
    $region16: #{_lambda_.1} parent=1 // pred_region
      %27 = dma.done [#allocation3], 2048
    $region17: #{_lambda_.1} parent=1 // pred_fallthru
      _
    %p28 = scmp.eq.s32.totalorder 0, 0
    // Predicated region
    $region18: #{_lambda_.1} parent=1 // pred_check
      %p29 = pneg %p28
    $region19: #{_lambda_.1} parent=1 // pred_check_branch
      %31 = sbr.rel (%p29) target = $region21
    $region20: #{_lambda_.1} parent=1 // pred_region
      %32 = vst [vmem:[%s3] sm:$0xff] 0.0
    $region21: #{_lambda_.1} parent=1 // pred_fallthru
      _
    %v33 = vld [vmem:[%s3] sm:$0xff]
    %v34 = vld [vmem:[%s0] sm:$0xff]
    %v35 = vld [vmem:[#allocation2] sm:$0xff]
    %v36 = vld [vmem:[#allocation2 + $0x8] sm:$0xff]
    %v37 = vld [vmem:[#allocation2 + $0x10] sm:$0xff]
    %v38 = vld [vmem:[#allocation2 + $0x18] sm:$0xff]
    %v39 = vld [vmem:[#allocation2 + $0x20] sm:$0xff]
    %v40 = vld [vmem:[#allocation2 + $0x28] sm:$0xff]
    %v41 = vld [vmem:[#allocation2 + $0x30] sm:$0xff]
    %v42 = vld [vmem:[#allocation2 + $0x38] sm:$0xff]
    %v43 = vld [vmem:[#allocation2 + $0x40] sm:$0xff]
    %v44 = vld [vmem:[#allocation2 + $0x48] sm:$0xff]
    %v45 = vld [vmem:[#allocation2 + $0x50] sm:$0xff]
    %v46 = vld [vmem:[#allocation2 + $0x58] sm:$0xff]
    %v47 = vld [vmem:[#allocation2 + $0x60] sm:$0xff]
    %v48 = vld [vmem:[#allocation2 + $0x68] sm:$0xff]
    %v49 = vld [vmem:[#allocation2 + $0x70] sm:$0xff]
    %v50 = vld [vmem:[#allocation2 + $0x78] sm:$0xff]
    %51 = vmatprep.subr.mxu0 0.0
    %52 = vmatpush1.msra.mxu0 %v35
    %53 = vmatprep.subr.mxu0 0.0
    %54 = vmatpush1.msra.mxu0 %v36
    %55 = vmatprep.subr.mxu0 0.0
    %56 = vmatpush1.msra.mxu0 %v37
    %57 = vmatprep.subr.mxu0 0.0
    %58 = vmatpush1.msra.mxu0 %v38
    %59 = vmatprep.subr.mxu0 0.0
    %60 = vmatpush1.msra.mxu0 %v39
    %61 = vmatprep.subr.mxu0 0.0
    %62 = vmatpush1.msra.mxu0 %v40
    %63 = vmatprep.subr.mxu0 0.0
    %64 = vmatpush1.msra.mxu0 %v41
    %65 = vmatprep.subr.mxu0 0.0
    %66 = vmatpush1.msra.mxu0 %v42
    %67 = vmatprep.subr.mxu0 0.0
    %68 = vmatpush1.msra.mxu0 %v43
    %69 = vmatprep.subr.mxu0 0.0
    %70 = vmatpush1.msra.mxu0 %v44
    %71 = vmatprep.subr.mxu0 0.0
    %72 = vmatpush1.msra.mxu0 %v45
    %73 = vmatprep.subr.mxu0 0.0
    %74 = vmatpush1.msra.mxu0 %v46
    %75 = vmatprep.subr.mxu0 0.0
    %76 = vmatpush1.msra.mxu0 %v47
    %77 = vmatprep.subr.mxu0 0.0
    %78 = vmatpush1.msra.mxu0 %v48
    %79 = vmatprep.subr.mxu0 0.0
    %80 = vmatpush1.msra.mxu0 %v49
    %81 = vmatprep.subr.mxu0 0.0
    %82 = vmatpush1.msra.mxu0 %v50
    %83 = vmatprep.subr.mxu0 0.0
    %84 = vmatpush1.msra.mxu0 0.0
    %85 = vmatprep.subr.mxu0 0.0
    %86 = vmatpush1.msra.mxu0 0.0
    %87 = vmatprep.subr.mxu0 0.0
    %88 = vmatpush1.msra.mxu0 0.0
    %89 = vmatprep.subr.mxu0 0.0
    %90 = vmatpush1.msra.mxu0 0.0
    %91 = vmatprep.subr.mxu0 0.0
    %92 = vmatpush1.msra.mxu0 0.0
    %93 = vmatprep.subr.mxu0 0.0
    %94 = vmatpush1.msra.mxu0 0.0
    %95 = vmatprep.subr.mxu0 0.0
    %96 = vmatpush1.msra.mxu0 0.0
    %97 = vmatprep.subr.mxu0 0.0
    %98 = vmatpush1.msra.mxu0 0.0
    %99 = vmatprep.subr.mxu0 0.0
    %100 = vmatpush1.msra.mxu0 0.0
    %101 = vmatprep.subr.mxu0 0.0
    %102 = vmatpush1.msra.mxu0 0.0
    %103 = vmatprep.subr.mxu0 0.0
    %104 = vmatpush1.msra.mxu0 0.0
    %105 = vmatprep.subr.mxu0 0.0
    %106 = vmatpush1.msra.mxu0 0.0
    %107 = vmatprep.subr.mxu0 0.0
    %108 = vmatpush1.msra.mxu0 0.0
    %109 = vmatprep.subr.mxu0 0.0
    %110 = vmatpush1.msra.mxu0 0.0
    %111 = vmatprep.subr.mxu0 0.0
    %112 = vmatpush1.msra.mxu0 0.0
    %113 = vmatprep.subr.mxu0 0.0
    %114 = vmatpush1.msra.mxu0 0.0
    %115 = vmatprep.mubr.f32.mxu0 0.0
    %116 = vmatmul.mubr.f32.gmra.mrb[0].mxu0 %v34
    %v117 = vpop.f32.mrb[0].mxu0
    %v118 = vadd.f32 0.0, %v117
    %v119 = vpop.f32.mrb[0].mxu0
    %120 = vdwg.mxu0
    %v121 = vadd.f32 %v33, %v118
    %122 = vst [vmem:[%s3] sm:$0xff] %v121
    // Predicated region
    $region22: #{_lambda_.1} parent=1 // pred_check
      %p123 = pneg %p28
    $region23: #{_lambda_.1} parent=1 // pred_check_branch
      %125 = sbr.rel (%p123) target = $region25
    $region24: #{_lambda_.1} parent=1 // pred_region
      %v126 = vld [vmem:[%s3] sm:$0xff]
      %v127 = vld [vmem:[%s2] sm:$0x1]
      %v129 = vlaneseq
      %v130 = vshrl.u32 %v129, 7
      %v131 = vsub.s32 0, %v130
      %v132 = vrot.slane %v127, %v131
      %v134 = vadd.f32 %v126, %v132
      %135 = vst [vmem:[%s3] sm:$0xff] %v134
    $region25: #{_lambda_.1} parent=1 // pred_fallthru
      _
    // Predicated region
    $region26: #{_lambda_.1} parent=1 // pred_check
      _
    $region27: #{_lambda_.1} parent=1 // pred_check_branch
      %137 = sbr.rel (0) target = $region29
    $region28: #{_lambda_.1} parent=1 // pred_region
      _
    $region29: #{_lambda_.1} parent=1 // pred_fallthru
      _
    // Predicated region
    $region30: #{_lambda_.1} parent=1 // pred_check
      _
    $region31: #{_lambda_.1} parent=1 // pred_check_branch
      %139 = sbr.rel (0) target = $region33
    $region32: #{_lambda_.1} parent=1 // pred_region
      _
    $region33: #{_lambda_.1} parent=1 // pred_fallthru
      _
    %140 = vsyncpa [#allocation3], 1

</llo_original>
